<compile_context>
chip_gen: v6e
topology: v6e:2x2x1
jax: 0.10.0
libtpu: 0.0.40
codegen_flags: <defaults>
</compile_context>

<pallas_src>
import functools
import math

import jax
import jax.numpy as jnp
from jax.experimental import pallas as pl
from jax.experimental.pallas import tpu as pltpu


_INV_SQRT2 = 1.0 / math.sqrt(2.0)


def _round_up(x, m):
    return ((x + m - 1) // m) * m


def _nbytes(shape, dtype):
    return int(math.prod(shape)) * jnp.dtype(dtype).itemsize


def _sublane_pack(dtype):
    # Rows per packed sublane group: 8 for 4-byte, 16 for 2-byte, 32 for 1-byte dtypes.
    return max(8, 32 // jnp.dtype(dtype).itemsize)


def _vmem_budget_bytes():
    """Generation-aware scoped-VMEM ceiling: physical capacity minus headroom."""
    cap = None
    try:
        info = pltpu.get_tpu_info()
        cap = int(getattr(info, "vmem_capacity_bytes", 0)) or None
    except Exception:
        cap = None
    if cap is None:
        cap = 64 << 20  # conservative: v7x has 64 MiB VMEM per TensorCore
    return max(cap - (12 << 20), 24 << 20)


def _pick_hidden_tile(H, max_th):
    """Hidden tile th: full H when it fits, else a 128-multiple divisor, else pad H."""
    if H <= max_th:
        return H, H
    for cand in range(max_th - (max_th % 128), 127, -128):
        if H % cand == 0:
            return cand, H
    th = 512
    return th, _round_up(H, th)  # zero-pad H; GELU(0)=0 and W2 pad rows are 0 -> no effect


def _mlp_kernel(x_ref, w1_ref, b1_ref, w2_ref, b2_ref, o_ref, acc_ref):
    # x_ref: (TM, C_in)   w1_ref: (C_in, TH)   b1_ref: (1, TH)
    # w2_ref: (TH, C_op)  b2_ref: (1, C_op)    o_ref: (TM, C_op)   acc_ref: (TM, C_op) f32
    k = pl.program_id(1)

    @pl.when(k == 0)
    def _():
        acc_ref[...] = jnp.zeros_like(acc_ref)

    # fc1 on the current hidden chunk: native-dtype operands straight into the MXU,
    # f32 accumulation; bias add in f32.
    h = jnp.dot(x_ref[...], w1_ref[...], preferred_element_type=jnp.float32)
    h = h + b1_ref[...].astype(jnp.float32)

    # Exact GELU (matches nn.GELU(approximate='none')): 0.5*x*(1+erf(x/sqrt(2))).
    h = 0.5 * h * (1.0 + jax.lax.erf(h * _INV_SQRT2))

    # dropout(p=0.0) is identity in train and eval -> no-op.

    # fc2 partial product for this hidden chunk, accumulated in the f32 scratch.
    acc_ref[...] += jnp.dot(h.astype(w2_ref.dtype), w2_ref[...],
                            preferred_element_type=jnp.float32)

    @pl.when(k == pl.num_programs(1) - 1)
    def _():
        o_ref[...] = (acc_ref[...] + b2_ref[...].astype(jnp.float32)).astype(o_ref.dtype)


@functools.partial(
    jax.jit,
    static_argnames=("tile_m", "max_hidden_tile", "pad_out_to_lanes",
                     "compute_dtype", "vmem_limit_bytes"))
def mlp_pallas(x, w1, b1, w2, b2, *, tile_m=512, max_hidden_tile=1024,
               pad_out_to_lanes=True, compute_dtype=None, vmem_limit_bytes=None):
    """x: (B, N, C_in) -> (B, N, C_out). Weights stored (in, out): w1 (C_in,H), w2 (H,C_out)."""
    B, N, C_in = x.shape
    H = w1.shape[1]
    C_out = w2.shape[1]
    rows = B * N

    # Optional low-precision MXU feed (accumulation stays f32 in the kernel).
    if compute_dtype is not None:
        x = x.astype(compute_dtype)
        w1 = w1.astype(compute_dtype)
        w2 = w2.astype(compute_dtype)
    out_dtype = x.dtype

    # Lane-dense output: fold C_out padding (zero columns) into W2/b2.
    C_op = C_out
    if pad_out_to_lanes and C_out % 128 != 0:
        C_op = _round_up(C_out, 128)
        w2 = jnp.pad(w2, ((0, 0), (0, C_op - C_out)))
        b2 = jnp.pad(b2, (0, C_op - C_out))

    # VMEM budget (generation-aware) and hidden-dim tiling.
    vmem_budget = _vmem_budget_bytes() if vmem_limit_bytes is None else int(vmem_limit_bytes)
    max_th = max_hidden_tile if vmem_budget >= (48 << 20) else 512
    th, H_pad = _pick_hidden_tile(H, max_th)
    if H_pad != H:
        w1 = jnp.pad(w1, ((0, 0), (0, H_pad - H)))
        b1 = jnp.pad(b1, (0, H_pad - H))
        w2 = jnp.pad(w2, ((0, H_pad - H), (0, 0)))
    kt = H_pad // th

    # Row tiling: no wrapper-side pad/slice; ragged edge tile handled by Pallas masking.
    sub = _sublane_pack(x.dtype)
    x2d = x.reshape(rows, C_in)
    if rows < sub:
        # Tiny-row corner case only: pad up to one sublane group (< sub extra rows).
        x2d = jnp.pad(x2d, ((0, sub - rows), (0, 0)))
        rows_eff = sub
    else:
        rows_eff = rows
    tm = max(sub, min(_round_up(int(tile_m), sub), (rows_eff // sub) * sub))

    itm = jnp.dtype(x2d.dtype).itemsize
    itw = jnp.dtype(w1.dtype).itemsize

    def need_bytes(tm_):
        return (2 * tm_ * C_in * itm            # x tile (double-buffered)
                + 2 * C_in * th * itw           # W1 chunk (streamed, double-buffered)
                + 2 * th * 4                    # b1 chunk
                + 2 * th * C_op * itw           # W2 chunk (streamed, double-buffered)
                + 2 * C_op * 4                  # b2
                + 2 * tm_ * C_op * itm          # output tile
                + tm_ * C_op * 4                # f32 accumulator scratch
                + 2 * tm_ * th * 4              # f32 fc1/GELU intermediate headroom
                + (2 << 20))                    # misc slack

    # Shrink the row tile if the working set would blow the per-core VMEM budget.
    while need_bytes(tm) > vmem_budget and tm > sub:
        tm = max(sub, _round_up(tm // 2, sub))

    # Megacore balance (v7x: 2 TCs): ensure at least 2 row tiles when rows allow it.
    mt = pl.cdiv(rows_eff, tm)
    if mt < 2 and rows_eff >= 2 * sub:
        tm = min(_round_up(pl.cdiv(rows_eff, 2), sub), (rows_eff // sub) * sub)
        mt = pl.cdiv(rows_eff, tm)

    if vmem_limit_bytes is None:
        vmem_limit = int(min(max(need_bytes(tm), 16 << 20), vmem_budget))
    else:
        vmem_limit = int(vmem_limit_bytes)

    b1_2d = b1.reshape(1, H_pad)
    b2_2d = b2.reshape(1, C_op)

    # Advisory cost estimate (consistent row count for flops and bytes).
    cost = pl.CostEstimate(
        flops=2 * rows * (C_in * H + H * C_out),
        transcendentals=rows * H,
        bytes_accessed=(_nbytes((rows, C_in), x2d.dtype)
                        + _nbytes((C_in, H_pad), w1.dtype) + _nbytes((1, H_pad), b1.dtype)
                        + _nbytes((H_pad, C_op), w2.dtype) + _nbytes((1, C_op), b2.dtype)
                        + _nbytes((rows, C_op), out_dtype)),
    )

    out2d = pl.pallas_call(
        _mlp_kernel,
        out_shape=jax.ShapeDtypeStruct((rows_eff, C_op), out_dtype),
        grid_spec=pltpu.PrefetchScalarGridSpec(
            num_scalar_prefetch=0,
            grid=(mt, kt),                                   # rows parallel, hidden reduction
            in_specs=[
                pl.BlockSpec((tm, C_in),  lambda i, k: (i, 0)),   # x row tile (revisited over k)
                pl.BlockSpec((C_in, th),  lambda i, k: (0, k)),   # W1 hidden chunk (streamed)
                pl.BlockSpec((1, th),     lambda i, k: (0, k)),   # b1 chunk
                pl.BlockSpec((th, C_op),  lambda i, k: (k, 0)),   # W2 hidden chunk (streamed)
                pl.BlockSpec((1, C_op),   lambda i, k: (0, 0)),   # b2 (constant)
            ],
            out_specs=pl.BlockSpec((tm, C_op), lambda i, k: (i, 0)),
            scratch_shapes=[pltpu.VMEM((tm, C_op), jnp.float32)],
        ),
        compiler_params=pltpu.CompilerParams(
            dimension_semantics=("parallel", "arbitrary"),
            vmem_limit_bytes=vmem_limit,
        ),
        cost_estimate=cost,
    )(x2d, w1, b1_2d, w2, b2_2d)

    if rows_eff != rows or C_op != C_out:
        out2d = out2d[:rows, :C_out]
    return out2d.reshape(B, N, C_out)


def _init_linear(key, fan_in, fan_out, dtype=jnp.float32):
    # Deterministic init mimicking nn.Linear default: U(-1/sqrt(fan_in), 1/sqrt(fan_in)).
    kw, kb = jax.random.split(key)
    bound = 1.0 / math.sqrt(fan_in)
    w = jax.random.uniform(kw, (fan_in, fan_out), dtype, minval=-bound, maxval=bound)
    b = jax.random.uniform(kb, (fan_out,), dtype, minval=-bound, maxval=bound)
    return w, b


def _mlp_ref(x, w1, b1, w2, b2):
    h = x @ w1 + b1
    h = 0.5 * h * (1.0 + jax.lax.erf(h / math.sqrt(2.0)))
    return h @ w2 + b2


if __name__ == "__main__":
    key = jax.random.PRNGKey(0)
    k_x, k_fc1, k_fc2 = jax.random.split(key, 3)

    # Small shapes consistent with the module: tokens (B, N, C_in).
    B, N = 2, 8
    in_features, hidden_features, out_features = 32, 64, 32

    x = jax.random.normal(k_x, (B, N, in_features), jnp.float32)
    w1, b1 = _init_linear(k_fc1, in_features, hidden_features)
    w2, b2 = _init_linear(k_fc2, hidden_features, out_features)

    out = jax.block_until_ready(mlp_pallas(x, w1, b1, w2, b2))
    ref = _mlp_ref(x, w1, b1, w2, b2)
    assert out.shape == (B, N, out_features)
    assert jnp.allclose(out, ref, atol=1e-5, rtol=1e-5), "mismatch vs reference"

    # Ragged-row path: rows (= 26) not divisible by the row tile -> Pallas edge-block
    # masking (no wrapper-side pad of x and no output row slice).
    x2 = jax.random.normal(jax.random.PRNGKey(1), (2, 13, in_features), jnp.float32)
    out2 = jax.block_until_ready(mlp_pallas(x2, w1, b1, w2, b2, tile_m=8))
    ref2 = _mlp_ref(x2, w1, b1, w2, b2)
    assert out2.shape == (2, 13, out_features)
    assert jnp.allclose(out2, ref2, atol=1e-5, rtol=1e-5), "mismatch vs reference (ragged rows)"

    # Mixed-precision MXU path: bf16 operands, f32 accumulation (loose tolerance expected).
    out_bf = jax.block_until_ready(
        mlp_pallas(x, w1, b1, w2, b2, compute_dtype=jnp.bfloat16))
    assert out_bf.shape == (B, N, out_features) and out_bf.dtype == jnp.bfloat16
    assert jnp.allclose(out_bf.astype(jnp.float32), ref, atol=5e-2, rtol=5e-2), \
        "mismatch vs reference (bf16 compute)"

    print("KERNEL_OK")
</pallas_src>

<mosaic_0001>
module attributes {stable_mosaic.version = 11 : i64} {
  func.func @_mlp_kernel(%arg0: i32, %arg1: i32, %arg2: memref<8x32xf32, #tpu.memory_space<vmem>>, %arg3: memref<32x64xf32, #tpu.memory_space<vmem>>, %arg4: memref<1x64xf32, #tpu.memory_space<vmem>>, %arg5: memref<64x128xf32, #tpu.memory_space<vmem>>, %arg6: memref<1x128xf32, #tpu.memory_space<vmem>>, %arg7: memref<8x128xf32, #tpu.memory_space<vmem>>, %arg8: memref<8x128xf32, #tpu.memory_space<vmem>>) attributes {dimension_semantics = [#tpu.dimension_semantics<parallel>, #tpu.dimension_semantics<arbitrary>], iteration_bounds = array<i64: 2, 1>, scalar_prefetch = 0 : i64, scratch_operands = 1 : i64, tpu.core_type = #tpu.core_type<tc>, window_params = [{transform_indices = @transform_0, window_bounds = array<i64: 8, 32>}, {transform_indices = @transform_1, window_bounds = array<i64: 32, 64>}, {transform_indices = @transform_2, window_bounds = array<i64: 1, 64>}, {transform_indices = @transform_3, window_bounds = array<i64: 64, 128>}, {pipeline_mode = #tpu.pipeline_mode<synchronous>, transform_indices = @transform_4, window_bounds = array<i64: 1, 128>}, {transform_indices = @transform_5, window_bounds = array<i64: 8, 128>}]} {
    %c0_i32 = arith.constant 0 : i32
    %0 = arith.cmpi eq, %arg1, %c0_i32 : i32
    %1 = arith.extui %0 : i1 to i32
    %c0_i32_0 = arith.constant 0 : i32
    %2 = arith.cmpi ne, %1, %c0_i32_0 : i32
    scf.if %2 {
      %cst_18 = arith.constant 0.000000e+00 : f32
      %25 = vector.broadcast %cst_18 : f32 to vector<8x128xf32>
      %c0_19 = arith.constant 0 : index
      %c0_20 = arith.constant 0 : index
      %26 = vector.load %arg8[%c0_19, %c0_20] : memref<8x128xf32, #tpu.memory_space<vmem>>, vector<8x128xf32>
      tpu.vector_store %arg8[%c0_19, %c0_20], %25 {strides = array<i32>} : memref<8x128xf32, #tpu.memory_space<vmem>>, vector<8x128xf32>,
    } else {
    }
    %c0 = arith.constant 0 : index
    %c0_1 = arith.constant 0 : index
    %3 = vector.load %arg2[%c0, %c0_1] : memref<8x32xf32, #tpu.memory_space<vmem>>, vector<8x32xf32>
    %c0_2 = arith.constant 0 : index
    %c0_3 = arith.constant 0 : index
    %4 = vector.load %arg3[%c0_2, %c0_3] : memref<32x64xf32, #tpu.memory_space<vmem>>, vector<32x64xf32>
    %cst = arith.constant dense<0.000000e+00> : vector<8x64xf32>
    %5 = tpu.matmul %3, %4, %cst {dimension_numbers = #tpu.dot_dimension_numbers<[1], [0], [0], [1], [0, 0, 1, 1], [], []>} : vector<8x32xf32>, vector<32x64xf32>, vector<8x64xf32> -> vector<8x64xf32>
    %c0_4 = arith.constant 0 : index
    %c0_5 = arith.constant 0 : index
    %6 = vector.load %arg4[%c0_4, %c0_5] : memref<1x64xf32, #tpu.memory_space<vmem>>, vector<1x64xf32>
    %7 = vector.broadcast %6 : vector<1x64xf32> to vector<8x64xf32>
    %8 = arith.addf %5, %7 : vector<8x64xf32>
    %cst_6 = arith.constant 5.000000e-01 : f32
    %9 = vector.broadcast %cst_6 : f32 to vector<8x64xf32>
    %10 = arith.mulf %9, %8 : vector<8x64xf32>
    %cst_7 = arith.constant 0.707106769 : f32
    %11 = vector.broadcast %cst_7 : f32 to vector<8x64xf32>
    %12 = arith.mulf %8, %11 : vector<8x64xf32>
    %13 = math.erf %12 : vector<8x64xf32>
    %cst_8 = arith.constant 1.000000e+00 : f32
    %14 = vector.broadcast %cst_8 : f32 to vector<8x64xf32>
    %15 = arith.addf %14, %13 : vector<8x64xf32>
    %16 = arith.mulf %10, %15 : vector<8x64xf32>
    %c0_9 = arith.constant 0 : index
    %c0_10 = arith.constant 0 : index
    %17 = vector.load %arg8[%c0_9, %c0_10] : memref<8x128xf32, #tpu.memory_space<vmem>>, vector<8x128xf32>
    %c0_11 = arith.constant 0 : index
    %c0_12 = arith.constant 0 : index
    %18 = vector.load %arg5[%c0_11, %c0_12] : memref<64x128xf32, #tpu.memory_space<vmem>>, vector<64x128xf32>
    %cst_13 = arith.constant dense<0.000000e+00> : vector<8x128xf32>
    %19 = tpu.matmul %16, %18, %cst_13 {dimension_numbers = #tpu.dot_dimension_numbers<[1], [0], [0], [1], [0, 0, 1, 1], [], []>} : vector<8x64xf32>, vector<64x128xf32>, vector<8x128xf32> -> vector<8x128xf32>
    %20 = arith.addf %17, %19 : vector<8x128xf32>
    %c0_14 = arith.constant 0 : index
    %c0_15 = arith.constant 0 : index
    %21 = vector.load %arg8[%c0_14, %c0_15] : memref<8x128xf32, #tpu.memory_space<vmem>>, vector<8x128xf32>
    tpu.vector_store %arg8[%c0_14, %c0_15], %20 {strides = array<i32>} : memref<8x128xf32, #tpu.memory_space<vmem>>, vector<8x128xf32>,
    %c0_i32_16 = arith.constant 0 : i32
    %22 = arith.cmpi eq, %arg1, %c0_i32_16 : i32
    %23 = arith.extui %22 : i1 to i32
    %c0_i32_17 = arith.constant 0 : i32
    %24 = arith.cmpi ne, %23, %c0_i32_17 : i32
    scf.if %24 {
      %c0_18 = arith.constant 0 : index
      %c0_19 = arith.constant 0 : index
      %25 = vector.load %arg8[%c0_18, %c0_19] : memref<8x128xf32, #tpu.memory_space<vmem>>, vector<8x128xf32>
      %c0_20 = arith.constant 0 : index
      %c0_21 = arith.constant 0 : index
      %26 = vector.load %arg6[%c0_20, %c0_21] : memref<1x128xf32, #tpu.memory_space<vmem>>, vector<1x128xf32>
      %27 = vector.broadcast %26 : vector<1x128xf32> to vector<8x128xf32>
      %28 = arith.addf %25, %27 : vector<8x128xf32>
      %c0_22 = arith.constant 0 : index
      %c0_23 = arith.constant 0 : index
      %29 = vector.load %arg7[%c0_22, %c0_23] : memref<8x128xf32, #tpu.memory_space<vmem>>, vector<8x128xf32>
      tpu.vector_store %arg7[%c0_22, %c0_23], %28 {strides = array<i32>} : memref<8x128xf32, #tpu.memory_space<vmem>>, vector<8x128xf32>,
    } else {
    }
    return
  }
  func.func @transform_0(%arg0: i32, %arg1: i32) -> (i32, i32) {
    %c0_i32 = arith.constant 0 : i32
    %c0_i32_0 = arith.constant 0 : i32
    return %arg0, %c0_i32 : i32, i32
  }
  func.func @transform_1(%arg0: i32, %arg1: i32) -> (i32, i32) {
    %c0_i32 = arith.constant 0 : i32
    %c0_i32_0 = arith.constant 0 : i32
    return %c0_i32, %arg1 : i32, i32
  }
  func.func @transform_2(%arg0: i32, %arg1: i32) -> (i32, i32) {
    %c0_i32 = arith.constant 0 : i32
    %c0_i32_0 = arith.constant 0 : i32
    return %c0_i32, %arg1 : i32, i32
  }
  func.func @transform_3(%arg0: i32, %arg1: i32) -> (i32, i32) {
    %c0_i32 = arith.constant 0 : i32
    %c0_i32_0 = arith.constant 0 : i32
    return %arg1, %c0_i32 : i32, i32
  }
  func.func @transform_4(%arg0: i32, %arg1: i32) -> (i32, i32) {
    %c0_i32 = arith.constant 0 : i32
    %c0_i32_0 = arith.constant 0 : i32
    %c0_i32_1 = arith.constant 0 : i32
    return %c0_i32, %c0_i32_0 : i32, i32
  }
  func.func @transform_5(%arg0: i32, %arg1: i32) -> (i32, i32) {
    %c0_i32 = arith.constant 0 : i32
    %c0_i32_0 = arith.constant 0 : i32
    return %arg0, %c0_i32 : i32, i32
  }
}

</mosaic_0001>

<llo_original>
// kernel: mlp_pallas.1
$region0: #{mlp_pallas.1}
  #allocation0 [shape = 'u32[]', space=smem, size = 0x4, offset = 0x4, fixed_abs, tag = 'smem constant byte address 0x4 - core index']
  #allocation1 [shape = 'u32[144,128]{1,0:T(1,128)}', space=vmem, size = 0x12000, scoped, tag = 'internal scratch']
  #allocation2 [shape = 'f32[8,128]{1,0:T(8,128)}', space=vmem, size = 0x1000, scoped, tag = 'scratch operand']
  %s0 = inlined_call_operand.vmem [shape: f32[16,32], index: 0, kind: input, shape index: {}]
  %s1 = inlined_call_operand.vmem [shape: f32[32,64], index: 1, kind: input, shape index: {}]
  %s2 = inlined_call_operand.vmem [shape: f32[1,64], index: 2, kind: input, shape index: {}]
  %s3 = inlined_call_operand.vmem [shape: f32[64,128], index: 3, kind: input, shape index: {}]
  %s4 = inlined_call_operand.vmem [shape: f32[1,128], index: 4, kind: input, shape index: {}]
  %s5 = inlined_call_operand.vmem [shape: f32[16,128], index: 5, kind: output, shape index: {}]
  %s6 = sld [smem:[#allocation0]]
  $region61: #{mlp_pallas.1} parent=0
    _
  %s8 = ssub.s32 1, %s6
  %s9 = scalar_select 0, %s8, %s6
  loop: start=0, step=1, limit=4
  $region2: #{mlp_pallas.1} parent=0 // loop_pre_header
    _
  $region3: #{mlp_pallas.1} parent=0 // loop_header
    %s11 = sphi 0, %s15
    %p12 = scmp.ge.s32.totalorder %s11, 4
    %s18 = sphi 0, %s30
    %s19 = sphi 0, %s26
    %s20 = sphi 0, %s18
    %s21 = sphi 0, %s19
    %s22 = sphi 0, %s20
    %s23 = sphi 0, %s21
    %s33 = sphi 0, %s35
    %s36 = sphi 0, %s33
    %s37 = sphi 0, %s36
    %s53 = sphi 0, %s37
    %s59 = sphi 0, %s61
    %s62 = sphi 0, %s59
    %s63 = sphi 0, %s62
    %s79 = sphi 0, %s63
    %s85 = sphi 0, %s87
    %s88 = sphi 0, %s85
    %s89 = sphi 0, %s88
    %s105 = sphi 0, %s89
    %s111 = sphi 0, %s113
    %s114 = sphi 0, %s111
    %s115 = sphi 0, %s114
    %s131 = sphi 0, %s115
    %s135 = sphi 0, %s135
    %s137 = sphi 0, %s135
    %s138 = sphi 0, %s137
    %s152 = sphi 0, %s138
    %s158 = sphi 0, %s160
    %s161 = sphi 0, %s158
    %s162 = sphi 0, %s161
    %s178 = sphi 0, %s162
  $region4: #{mlp_pallas.1} parent=0 // loop_header_branch
    %14 = sbr.rel (%p12) target = $region8
  $region5: #{mlp_pallas.1} parent=0 // loop_body
    %s16 = ssub.s32 %s11, 1
    %s17 = ssub.s32 %s11, 2
    %s24 = sadd.s32 1, %s19
    %p25 = scmp.ge.s32.totalorder %s24, 1
    %s26 = scalar_select %p25, 0, %s24
    %s27 = sadd.s32 1, %s18
    %s28 = scalar_select %p25, %s27, %s18
    %p29 = scmp.ge.s32.totalorder %s28, 2
    %s30 = scalar_select %p29, 0, %s28
    %s31 = ssub.s32 %s18, %s30
    %p32 = scmp.eq.s32.totalorder %s31, 0
    %s34 = sadd.s32 %s33, 1
    %s35 = scalar_select %p32, %s33, %s34
    %p38 = pneg %p32
    %p39 = scmp.eq.s32.totalorder %s11, 1
    %p40 = por %p38, %p39
    %p41 = scmp.ne.s32.totalorder %s33, %s36
    %p42 = scmp.eq.s32.totalorder %s11, 0
    %p43 = por %p41, %p42
    %p44 = scmp.ne.s32.totalorder %s33, %s36
    %p45 = scmp.eq.s32.totalorder %s16, 1
    %p46 = por %p44, %p45
    %p47 = scmp.ne.s32.totalorder %s36, %s37
    %p48 = scmp.eq.s32.totalorder %s16, 0
    %p49 = por %p47, %p48
    %p50 = scmp.ne.s32.totalorder %s36, %s37
    %p51 = scmp.eq.s32.totalorder %s17, 1
    %p52 = por %p50, %p51
    %p54 = scmp.ne.s32.totalorder %s37, %s53
    %p55 = scmp.eq.s32.totalorder %s17, 0
    %p56 = por %p54, %p55
    %s57 = ssub.s32 %s19, %s26
    %p58 = scmp.eq.s32.totalorder %s57, 0
    %s60 = sadd.s32 %s59, 1
    %s61 = scalar_select %p58, %s59, %s60
    %p64 = pneg %p58
    %p65 = scmp.eq.s32.totalorder %s11, 1
    %p66 = por %p64, %p65
    %p67 = scmp.ne.s32.totalorder %s59, %s62
    %p68 = scmp.eq.s32.totalorder %s11, 0
    %p69 = por %p67, %p68
    %p70 = scmp.ne.s32.totalorder %s59, %s62
    %p71 = scmp.eq.s32.totalorder %s16, 1
    %p72 = por %p70, %p71
    %p73 = scmp.ne.s32.totalorder %s62, %s63
    %p74 = scmp.eq.s32.totalorder %s16, 0
    %p75 = por %p73, %p74
    %p76 = scmp.ne.s32.totalorder %s62, %s63
    %p77 = scmp.eq.s32.totalorder %s17, 1
    %p78 = por %p76, %p77
    %p80 = scmp.ne.s32.totalorder %s63, %s79
    %p81 = scmp.eq.s32.totalorder %s17, 0
    %p82 = por %p80, %p81
    %s83 = ssub.s32 %s19, %s26
    %p84 = scmp.eq.s32.totalorder %s83, 0
    %s86 = sadd.s32 %s85, 1
    %s87 = scalar_select %p84, %s85, %s86
    %p90 = pneg %p84
    %p91 = scmp.eq.s32.totalorder %s11, 1
    %p92 = por %p90, %p91
    %p93 = scmp.ne.s32.totalorder %s85, %s88
    %p94 = scmp.eq.s32.totalorder %s11, 0
    %p95 = por %p93, %p94
    %p96 = scmp.ne.s32.totalorder %s85, %s88
    %p97 = scmp.eq.s32.totalorder %s16, 1
    %p98 = por %p96, %p97
    %p99 = scmp.ne.s32.totalorder %s88, %s89
    %p100 = scmp.eq.s32.totalorder %s16, 0
    %p101 = por %p99, %p100
    %p102 = scmp.ne.s32.totalorder %s88, %s89
    %p103 = scmp.eq.s32.totalorder %s17, 1
    %p104 = por %p102, %p103
    %p106 = scmp.ne.s32.totalorder %s89, %s105
    %p107 = scmp.eq.s32.totalorder %s17, 0
    %p108 = por %p106, %p107
    %s109 = ssub.s32 %s19, %s26
    %p110 = scmp.eq.s32.totalorder %s109, 0
    %s112 = sadd.s32 %s111, 1
    %s113 = scalar_select %p110, %s111, %s112
    %p116 = pneg %p110
    %p117 = scmp.eq.s32.totalorder %s11, 1
    %p118 = por %p116, %p117
    %p119 = scmp.ne.s32.totalorder %s111, %s114
    %p120 = scmp.eq.s32.totalorder %s11, 0
    %p121 = por %p119, %p120
    %p122 = scmp.ne.s32.totalorder %s111, %s114
    %p123 = scmp.eq.s32.totalorder %s16, 1
    %p124 = por %p122, %p123
    %p125 = scmp.ne.s32.totalorder %s114, %s115
    %p126 = scmp.eq.s32.totalorder %s16, 0
    %p127 = por %p125, %p126
    %p128 = scmp.ne.s32.totalorder %s114, %s115
    %p129 = scmp.eq.s32.totalorder %s17, 1
    %p130 = por %p128, %p129
    %p132 = scmp.ne.s32.totalorder %s115, %s131
    %p133 = scmp.eq.s32.totalorder %s17, 0
    %p134 = por %p132, %p133
    %s136 = sadd.s32 %s135, 1
    %p139 = scmp.eq.s32.totalorder %s11, 1
    %p140 = scmp.ne.s32.totalorder %s135, %s137
    %p141 = scmp.eq.s32.totalorder %s11, 0
    %p142 = por %p140, %p141
    %p143 = scmp.ne.s32.totalorder %s135, %s137
    %p144 = scmp.eq.s32.totalorder %s16, 1
    %p145 = por %p143, %p144
    %p146 = scmp.ne.s32.totalorder %s137, %s138
    %p147 = scmp.eq.s32.totalorder %s16, 0
    %p148 = por %p146, %p147
    %p149 = scmp.ne.s32.totalorder %s137, %s138
    %p150 = scmp.eq.s32.totalorder %s17, 1
    %p151 = por %p149, %p150
    %p153 = scmp.ne.s32.totalorder %s138, %s152
    %p154 = scmp.eq.s32.totalorder %s17, 0
    %p155 = por %p153, %p154
    %s156 = ssub.s32 %s18, %s30
    %p157 = scmp.eq.s32.totalorder %s156, 0
    %s159 = sadd.s32 %s158, 1
    %s160 = scalar_select %p157, %s158, %s159
    %p163 = pneg %p157
    %p164 = scmp.eq.s32.totalorder %s11, 1
    %p165 = por %p163, %p164
    %p166 = scmp.ne.s32.totalorder %s158, %s161
    %p167 = scmp.eq.s32.totalorder %s11, 0
    %p168 = por %p166, %p167
    %p169 = scmp.ne.s32.totalorder %s158, %s161
    %p170 = scmp.eq.s32.totalorder %s16, 1
    %p171 = por %p169, %p170
    %p172 = scmp.ne.s32.totalorder %s161, %s162
    %p173 = scmp.eq.s32.totalorder %s16, 0
    %p174 = por %p172, %p173
    %p175 = scmp.ne.s32.totalorder %s161, %s162
    %p176 = scmp.eq.s32.totalorder %s17, 1
    %p177 = por %p175, %p176
    %p179 = scmp.ne.s32.totalorder %s162, %s178
    %p180 = scmp.eq.s32.totalorder %s17, 0
    %p181 = por %p179, %p180
    %p182 = scmp.le.s32.totalorder 1, %s11
    %p183 = scmp.lt.s32.totalorder %s11, 3
    %p184 = pnand %p182, %p183
    %p185 = pneg %p184
    // Predicated region
    $region9: #{mlp_pallas.1} parent=5 // pred_check
      _
    $region10: #{mlp_pallas.1} parent=5 // pred_check_branch
      %187 = sbr.rel (%p184) target = $region12
    $region11: #{mlp_pallas.1} parent=5 // pred_region
      %s188 = ssub.s32 %s11, 1
      // Predicated region
      $region13: #{mlp_pallas.1} parent=11 // pred_check
        %p189 = pneg %p75
      $region14: #{mlp_pallas.1} parent=11 // pred_check_branch
        %191 = sbr.rel (%p189) target = $region16
      $region15: #{mlp_pallas.1} parent=11 // pred_region
        %p192 = scmp.lt.s32.totalorder %s21, 0
        %s193 = scalar_select %p192, %s21, 0
        %s194 = smul.addr %s193, 8
        %s195 = scalar_lea.vmem %s1, %s194
      $region16: #{mlp_pallas.1} parent=11 // pred_fallthru
        _
      // Predicated region
      $region17: #{mlp_pallas.1} parent=11 // pred_check
        %p196 = pneg %p101
      $region18: #{mlp_pallas.1} parent=11 // pred_check_branch
        %198 = sbr.rel (%p196) target = $region20
      $region19: #{mlp_pallas.1} parent=11 // pred_region
        %p199 = scmp.lt.s32.totalorder %s21, 0
        %s200 = scalar_select %p199, %s21, 0
        %s201 = scalar_lea.vmem %s2, %s200
      $region20: #{mlp_pallas.1} parent=11 // pred_fallthru
        _
      // Predicated region
      $region21: #{mlp_pallas.1} parent=11 // pred_check
        %p202 = pneg %p127
      $region22: #{mlp_pallas.1} parent=11 // pred_check_branch
        %204 = sbr.rel (%p202) target = $region24
      $region23: #{mlp_pallas.1} parent=11 // pred_region
        %s205 = smul.u32 8, %s21
        %p206 = scmp.lt.s32.totalorder %s205, 7
        %s207 = scalar_select %p206, %s205, 7
        %s208 = smul.addr %s207, 8
        %s209 = scalar_lea.vmem %s3, %s208
        %s210 = smul.u32 8, %s21
      $region24: #{mlp_pallas.1} parent=11 // pred_fallthru
        _
      // Predicated region
      $region25: #{mlp_pallas.1} parent=11 // pred_check
        %p211 = pneg %p148
      $region26: #{mlp_pallas.1} parent=11 // pred_check_branch
        %213 = sbr.rel (%p211) target = $region28
      $region27: #{mlp_pallas.1} parent=11 // pred_region
        _
      $region28: #{mlp_pallas.1} parent=11 // pred_fallthru
        _
    $region12: #{mlp_pallas.1} parent=5 // pred_fallthru
      _
    %p214 = scmp.lt.s32.totalorder %s11, 2
    // Predicated region
    $region29: #{mlp_pallas.1} parent=5 // pred_check
      %p215 = pneg %p214
    $region30: #{mlp_pallas.1} parent=5 // pred_check_branch
      %217 = sbr.rel (%p215) target = $region32
    $region31: #{mlp_pallas.1} parent=5 // pred_region
      // Predicated region
      $region33: #{mlp_pallas.1} parent=31 // pred_check
        %p218 = pneg %p43
      $region34: #{mlp_pallas.1} parent=31 // pred_check_branch
        %220 = sbr.rel (%p218) target = $region36
      $region35: #{mlp_pallas.1} parent=31 // pred_region
        %p221 = scmp.lt.s32.totalorder %s18, 1
        %s222 = scalar_select %p221, %s18, 1
        %s223 = smul.addr %s222, 8
        %s224 = scalar_lea.vmem %s0, %s223
      $region36: #{mlp_pallas.1} parent=31 // pred_fallthru
        _
    $region32: #{mlp_pallas.1} parent=5 // pred_fallthru
      _
    %p225 = scmp.le.s32.totalorder 1, %s11
    %p226 = scmp.lt.s32.totalorder %s11, 3
    %p227 = pnand %p225, %p226
    %p228 = pneg %p227
    // Predicated region
    $region37: #{mlp_pallas.1} parent=5 // pred_check
      _
    $region38: #{mlp_pallas.1} parent=5 // pred_check_branch
      %230 = sbr.rel (%p227) target = $region40
    $region39: #{mlp_pallas.1} parent=5 // pred_region
      %s231 = ssub.s32 %s11, 1
      %p232 = scmp.lt.s32.totalorder %s20, 1
      %s233 = scalar_select %p232, %s20, 1
      %s234 = smul.addr %s233, 8
      %s235 = scalar_lea.vmem %s0, %s234
      %p236 = pneg %p49
      %p237 = pneg %p46
      %p238 = scmp.lt.s32.totalorder %s21, 0
      %s239 = scalar_select %p238, %s21, 0
      %s240 = smul.addr %s239, 8
      %s241 = scalar_lea.vmem %s1, %s240
      %p242 = pneg %p75
      %p243 = pneg %p72
      %p244 = scmp.lt.s32.totalorder %s21, 0
      %s245 = scalar_select %p244, %s21, 0
      %s246 = scalar_lea.vmem %s2, %s245
      %p247 = pneg %p101
      %p248 = pneg %p98
      %s249 = smul.u32 8, %s21
      %p250 = scmp.lt.s32.totalorder %s249, 7
      %s251 = scalar_select %p250, %s249, 7
      %s252 = smul.addr %s251, 8
      %s253 = scalar_lea.vmem %s3, %s252
      %p254 = pneg %p127
      %p255 = pneg %p124
      %p256 = pneg %p148
      %p257 = pneg %p145
      %p258 = pneg %p174
      %p259 = pneg %p171
      %p260 = scmp.lt.s32.totalorder %s20, 1
      %s261 = scalar_select %p260, %s20, 1
      %s262 = smul.addr %s261, 8
      %s263 = scalar_lea.vmem %s5, %s262
      %p264 = scmp.lt.s32.totalorder %s20, 1
      %s265 = scalar_select %p264, %s20, 1
      %s266 = smul.addr %s265, 8
      %s267 = scalar_lea.vmem %s0, %s266
      %p268 = scmp.lt.s32.totalorder %s21, 0
      %s269 = scalar_select %p268, %s21, 0
      %s270 = smul.addr %s269, 8
      %s271 = scalar_lea.vmem %s1, %s270
      %p272 = scmp.lt.s32.totalorder %s21, 0
      %s273 = scalar_select %p272, %s21, 0
      %s274 = scalar_lea.vmem %s2, %s273
      %s275 = smul.u32 8, %s21
      %p276 = scmp.lt.s32.totalorder %s275, 7
      %s277 = scalar_select %p276, %s275, 7
      %s278 = smul.addr %s277, 8
      %s279 = scalar_lea.vmem %s3, %s278
      %s280 = smul.u32 8, %s21
      %p281 = scmp.lt.s32.totalorder %s20, 1
      %s282 = scalar_select %p281, %s20, 1
      %s283 = smul.addr %s282, 8
      %s284 = scalar_lea.vmem %s5, %s283
      %p285 = scmp.eq.s32.totalorder %s21, 0
      // Predicated region
      $region41: #{mlp_pallas.1} parent=39 // pred_check
        %p286 = pneg %p285
      $region42: #{mlp_pallas.1} parent=39 // pred_check_branch
        %288 = sbr.rel (%p286) target = $region44
      $region43: #{mlp_pallas.1} parent=39 // pred_region
        %289 = vst [vmem:[#allocation2] sm:$0xff] 0.0
      $region44: #{mlp_pallas.1} parent=39 // pred_fallthru
        _
      %v290 = vld [vmem:[%s267] sm:$0xff]
      %v291 = vld [vmem:[%s271] sm:$0xff]
      %v292 = vld [vmem:[%s271 + $0x8] sm:$0xff]
      %v293 = vld [vmem:[%s271 + $0x10] sm:$0xff]
      %v294 = vld [vmem:[%s271 + $0x18] sm:$0xff]
      %v295 = vld [vmem:[%s274] sm:$0x1]
      %v297 = vlaneseq
      %v298 = vshrl.u32 %v297, 7
      %v299 = vsub.s32 0, %v298
      %v300 = vrot.slane %v295, %v299
      %vm302 = vcmask 261120
      %v304 = vsel %vm302, %v290, 0
      %306 = vmatprep.subr.mxu0 0.0
      %307 = vmatpush1.msra.mxu0 0.0
      %308 = vmatprep.subr.mxu0 0.0
      %309 = vmatpush1.msra.mxu0 0.0
      %310 = vmatprep.subr.mxu0 0.0
      %311 = vmatpush1.msra.mxu0 0.0
      %312 = vmatprep.subr.mxu0 0.0
      %313 = vmatpush1.msra.mxu0 0.0
      %314 = vmatprep.subr.mxu0 0.0
      %315 = vmatpush1.msra.mxu0 0.0
      %316 = vmatprep.subr.mxu0 0.0
      %317 = vmatpush1.msra.mxu0 0.0
      %318 = vmatprep.subr.mxu0 0.0
      %319 = vmatpush1.msra.mxu0 0.0
      %320 = vmatprep.subr.mxu0 0.0
      %321 = vmatpush1.msra.mxu0 0.0
      %322 = vmatprep.subr.mxu0 0.0
      %323 = vmatpush1.msra.mxu0 0.0
      %324 = vmatprep.subr.mxu0 0.0
      %325 = vmatpush1.msra.mxu0 0.0
      %326 = vmatprep.subr.mxu0 0.0
      %327 = vmatpush1.msra.mxu0 0.0
      %328 = vmatprep.subr.mxu0 0.0
      %329 = vmatpush1.msra.mxu0 0.0
      %330 = vmatprep.subr.mxu0 0.0
      %331 = vmatpush1.msra.mxu0 %v294
      %332 = vmatprep.subr.mxu0 0.0
      %333 = vmatpush1.msra.mxu0 %v293
      %334 = vmatprep.subr.mxu0 0.0
      %335 = vmatpush1.msra.mxu0 %v292
      %336 = vmatprep.subr.mxu0 0.0
      %337 = vmatpush1.msra.mxu0 %v291
      %338 = vmatprep.subr.mxu0 0.0
      %339 = vmatpush2.msra.mxu0 0.0
      %340 = vmatprep.subr.mxu0 0.0
      %341 = vmatpush2.msra.mxu0 0.0
      %342 = vmatprep.subr.mxu0 0.0
      %343 = vmatpush2.msra.mxu0 0.0
      %344 = vmatprep.subr.mxu0 0.0
      %345 = vmatpush2.msra.mxu0 0.0
      %346 = vmatprep.subr.mxu0 0.0
      %347 = vmatpush2.msra.mxu0 0.0
      %348 = vmatprep.subr.mxu0 0.0
      %349 = vmatpush2.msra.mxu0 0.0
      %350 = vmatprep.subr.mxu0 0.0
      %351 = vmatpush2.msra.mxu0 0.0
      %352 = vmatprep.subr.mxu0 0.0
      %353 = vmatpush2.msra.mxu0 0.0
      %354 = vmatprep.subr.mxu0 0.0
      %355 = vmatpush2.msra.mxu0 0.0
      %356 = vmatprep.subr.mxu0 0.0
      %357 = vmatpush2.msra.mxu0 0.0
      %358 = vmatprep.subr.mxu0 0.0
      %359 = vmatpush2.msra.mxu0 0.0
      %360 = vmatprep.subr.mxu0 0.0
      %361 = vmatpush2.msra.mxu0 0.0
      %362 = vmatprep.subr.mxu0 0.0
      %363 = vmatpush2.msra.mxu0 0.0
      %364 = vmatprep.subr.mxu0 0.0
      %365 = vmatpush2.msra.mxu0 0.0
      %366 = vmatprep.subr.mxu0 0.0
      %367 = vmatpush2.msra.mxu0 0.0
      %368 = vmatprep.subr.mxu0 0.0
      %369 = vmatpush2.msra.mxu0 0.0
      %370 = vmatprep.mubr.f32.mxu0 0.0
      %371 = vmatmul.mubr.f32.gmra.mxu0 %v304
      %v372 = vpop.f32.mrf.mxu0
      %v373 = vadd.f32 %v300, %v372
      %v374 = vpop.f32.mrf.mxu0
      %375 = vdwg.mxu0
      %v376 = vmul.f32 %v373, 0.5
      %v377 = vmul.f32 %v373, 0.70710677
      %v378 = verf.f32.pop %v377
      %v379 = vadd.f32 %v378, 1.0
      %v380 = vmul.f32 %v376, %v379
      %v381 = vld [vmem:[#allocation2] sm:$0xff]
      %v382 = vld [vmem:[%s279] sm:$0xff]
      %v383 = vld [vmem:[%s279 + $0x8] sm:$0xff]
      %v384 = vld [vmem:[%s279 + $0x10] sm:$0xff]
      %v385 = vld [vmem:[%s279 + $0x18] sm:$0xff]
      %v386 = vld [vmem:[%s279 + $0x20] sm:$0xff]
      %v387 = vld [vmem:[%s279 + $0x28] sm:$0xff]
      %v388 = vld [vmem:[%s279 + $0x30] sm:$0xff]
      %v389 = vld [vmem:[%s279 + $0x38] sm:$0xff]
      %vm390 = vcmask 523264
      %v392 = vsel %vm390, %v380, 0
      %394 = vmatprep.subr.mxu0 0.0
      %395 = vmatpush1.msra.mxu0 0.0
      %396 = vmatprep.subr.mxu0 0.0
      %397 = vmatpush1.msra.mxu0 0.0
      %398 = vmatprep.subr.mxu0 0.0
      %399 = vmatpush1.msra.mxu0 0.0
      %400 = vmatprep.subr.mxu0 0.0
      %401 = vmatpush1.msra.mxu0 0.0
      %402 = vmatprep.subr.mxu0 0.0
      %403 = vmatpush1.msra.mxu0 0.0
      %404 = vmatprep.subr.mxu0 0.0
      %405 = vmatpush1.msra.mxu0 0.0
      %406 = vmatprep.subr.mxu0 0.0
      %407 = vmatpush1.msra.mxu0 0.0
      %408 = vmatprep.subr.mxu0 0.0
      %409 = vmatpush1.msra.mxu0 0.0
      %410 = vmatprep.subr.mxu0 0.0
      %411 = vmatpush1.msra.mxu0 %v389
      %412 = vmatprep.subr.mxu0 0.0
      %413 = vmatpush1.msra.mxu0 %v388
      %414 = vmatprep.subr.mxu0 0.0
      %415 = vmatpush1.msra.mxu0 %v387
      %416 = vmatprep.subr.mxu0 0.0
      %417 = vmatpush1.msra.mxu0 %v386
      %418 = vmatprep.subr.mxu0 0.0
      %419 = vmatpush1.msra.mxu0 %v385
      %420 = vmatprep.subr.mxu0 0.0
      %421 = vmatpush1.msra.mxu0 %v384
      %422 = vmatprep.subr.mxu0 0.0
      %423 = vmatpush1.msra.mxu0 %v383
      %424 = vmatprep.subr.mxu0 0.0
      %425 = vmatpush1.msra.mxu0 %v382
      %426 = vmatprep.subr.mxu0 0.0
      %427 = vmatpush2.msra.mxu0 0.0
      %428 = vmatprep.subr.mxu0 0.0
      %429 = vmatpush2.msra.mxu0 0.0
      %430 = vmatprep.subr.mxu0 0.0
      %431 = vmatpush2.msra.mxu0 0.0
      %432 = vmatprep.subr.mxu0 0.0
      %433 = vmatpush2.msra.mxu0 0.0
      %434 = vmatprep.subr.mxu0 0.0
      %435 = vmatpush2.msra.mxu0 0.0
      %436 = vmatprep.subr.mxu0 0.0
      %437 = vmatpush2.msra.mxu0 0.0
      %438 = vmatprep.subr.mxu0 0.0
      %439 = vmatpush2.msra.mxu0 0.0
      %440 = vmatprep.subr.mxu0 0.0
      %441 = vmatpush2.msra.mxu0 0.0
      %442 = vmatprep.subr.mxu0 0.0
      %443 = vmatpush2.msra.mxu0 0.0
      %444 = vmatprep.subr.mxu0 0.0
      %445 = vmatpush2.msra.mxu0 0.0
      %446 = vmatprep.subr.mxu0 0.0
      %447 = vmatpush2.msra.mxu0 0.0
      %448 = vmatprep.subr.mxu0 0.0
      %449 = vmatpush2.msra.mxu0 0.0
      %450 = vmatprep.subr.mxu0 0.0
      %451 = vmatpush2.msra.mxu0 0.0
      %452 = vmatprep.subr.mxu0 0.0
      %453 = vmatpush2.msra.mxu0 0.0
      %454 = vmatprep.subr.mxu0 0.0
      %455 = vmatpush2.msra.mxu0 0.0
      %456 = vmatprep.subr.mxu0 0.0
      %457 = vmatpush2.msra.mxu0 0.0
      %458 = vmatprep.mubr.f32.mxu0 0.0
      %459 = vmatmul.mubr.f32.gmra.mxu0 %v392
      %v460 = vpop.f32.mrf.mxu0
      %v461 = vadd.f32 0.0, %v460
      %v462 = vpop.f32.mrf.mxu0
      %463 = vdwg.mxu0
      %v464 = vadd.f32 %v381, %v461
      %465 = vst [vmem:[#allocation2] sm:$0xff] %v464
      // Predicated region
      $region45: #{mlp_pallas.1} parent=39 // pred_check
        %p466 = pneg %p285
      $region46: #{mlp_pallas.1} parent=39 // pred_check_branch
        %468 = sbr.rel (%p466) target = $region48
      $region47: #{mlp_pallas.1} parent=39 // pred_region
        %v469 = vld [vmem:[#allocation2] sm:$0xff]
        %v470 = vld [vmem:[%s4] sm:$0x1]
        %v472 = vlaneseq
        %v473 = vshrl.u32 %v472, 7
        %v474 = vsub.s32 0, %v473
        %v475 = vrot.slane %v470, %v474
        %v477 = vadd.f32 %v469, %v475
        %478 = vst [vmem:[%s284] sm:$0xff] %v477
      $region48: #{mlp_pallas.1} parent=39 // pred_fallthru
        _
      %p479 = scmp.lt.s32.totalorder %s20, 1
      %s480 = scalar_select %p479, %s20, 1
      %s481 = smul.addr %s480, 8
      %s482 = scalar_lea.vmem %s5, %s481
      // Predicated region
      $region49: #{mlp_pallas.1} parent=39 // pred_check
        %p483 = pneg %p171
      $region50: #{mlp_pallas.1} parent=39 // pred_check_branch
        %485 = sbr.rel (%p483) target = $region52
      $region51: #{mlp_pallas.1} parent=39 // pred_region
        _
      $region52: #{mlp_pallas.1} parent=39 // pred_fallthru
        _
    $region40: #{mlp_pallas.1} parent=5 // pred_fallthru
      _
    %p486 = scmp.le.s32.totalorder 2, %s11
    // Predicated region
    $region53: #{mlp_pallas.1} parent=5 // pred_check
      %p487 = pneg %p486
    $region54: #{mlp_pallas.1} parent=5 // pred_check_branch
      %489 = sbr.rel (%p487) target = $region56
    $region55: #{mlp_pallas.1} parent=5 // pred_region
      %s490 = ssub.s32 %s11, 2
      // Predicated region
      $region57: #{mlp_pallas.1} parent=55 // pred_check
        %p491 = pneg %p177
      $region58: #{mlp_pallas.1} parent=55 // pred_check_branch
        %493 = sbr.rel (%p491) target = $region60
      $region59: #{mlp_pallas.1} parent=55 // pred_region
        %p494 = scmp.lt.s32.totalorder %s22, 1
        %s495 = scalar_select %p494, %s22, 1
        %s496 = smul.addr %s495, 8
        %s497 = scalar_lea.vmem %s5, %s496
      $region60: #{mlp_pallas.1} parent=55 // pred_fallthru
        _
    $region56: #{mlp_pallas.1} parent=5 // pred_fallthru
      _
  $region6: #{mlp_pallas.1} parent=0 // loop_footer
    %s15 = sadd.s32 1, %s11
  $region7: #{mlp_pallas.1} parent=0 // loop_footer_branch
    %10 = sbr.rel target = $region3
  $region8: #{mlp_pallas.1} parent=0 // loop_exit
    _

</llo_original>
